<compile_context>
chip_gen: v5e
topology: v5e:2x2
jax: 0.10.0
libtpu: 0.0.40
codegen_flags: <defaults>
</compile_context>

<pallas_src>
import jax
import jax.numpy as jnp
from jax import lax
from jax.experimental import pallas as pl
from jax.experimental.pallas import tpu as pltpu


def _pick_tiles(B, T):
    """Pick (batch tile TB, time tile TT).

    TT: largest multiple of 128 dividing T (capped at 2048); else full T.
    TB: largest multiple of 8 dividing B under an element budget; else full B.
    If the grid would be (1, 1), split one axis so the v7x megacore (2 TCs)
    always has >= 2 parallel grid steps.
    """
    if T % 128 == 0:
        TT = 128
        for cand in range(min(T, 2048), 0, -128):
            if T % cand == 0:
                TT = cand
                break
    else:
        TT = T  # full-extent block (allowed: equals array dim)

    budget = 16 * 1024  # TB * TT elements -> full-domain f32 temporaries ~0.5 MiB
    if B % 8 == 0:
        TB = 8
        while TB * 2 <= B and B % (TB * 2) == 0 and TB * 2 * TT <= budget:
            TB *= 2
    else:
        TB = B  # full-extent block (allowed: equals array dim)

    if B // TB == 1 and T // TT == 1:
        if TB % 16 == 0:
            TB //= 2          # still a multiple of 8 and divides B
        elif TT % 256 == 0:
            TT //= 2          # still a multiple of 128
    return TB, TT


def _make_kernel(use_rb, exponential, T, TT):
    """Build a kernel specialized on loss_type / exponential weighting."""

    def kernel(*refs):
        if use_rb:
            y_pre_ref, y_true_ref, lane_ref, out_ref = refs
        else:
            y_pre_ref, y_true_ref, out_ref = refs
            lane_ref = None

        x = y_pre_ref[...]                       # (TB, C, TTb) native dtype
        labels = y_true_ref[...]                 # (TB, TTb) int32
        TB, C, TTb = x.shape

        # Tiny class-index iota; broadcast happens inside the compares.
        cls_idx = lax.broadcasted_iota(jnp.int32, (1, C, TTb), 1)

        # ---- cross entropy (reduction='none'), reduced over the class axis ----
        # max / one-hot select are exact in the native dtype (incl. bf16);
        # the f32 cast is fused into the subtract + exp.
        m = jnp.max(x, axis=1, keepdims=True)                          # (TB,1,TT)
        ex = jnp.exp(x.astype(jnp.float32) - m.astype(jnp.float32))    # (TB,C,TT) f32
        sumexp = jnp.sum(ex, axis=1, keepdims=True)                    # (TB,1,TT) f32
        onehot = cls_idx == labels[:, None, :]                         # (TB,C,TT)
        label_logit = jnp.sum(jnp.where(onehot, x, 0.0), axis=1)       # (TB,TT), exact
        loss = (m[:, 0, :].astype(jnp.float32)
                + jnp.log(sumexp[:, 0, :])
                - label_logit.astype(jnp.float32))                     # (TB,TT) f32

        # ---- rule-based loss (only compiled for loss_type='cerbloss') ----
        if use_rb:
            lane = lane_ref[...]                                       # (TB,3) int32
            left = lane[:, 0:1]
            right = lane[:, 1:2]
            inter = lane[:, 2:3]
            # per-row "violation if predicted class == k" booleans, (TB,1)
            bad2 = left == 0
            bad4 = right == 0
            bad3 = ((left == 1) & (right == 0)) | (inter == 0)
            bad5 = ((left == 0) & (right == 1)) | (inter == 0)

            # first argmax over classes (matches the reference tie behavior)
            masked_idx = jnp.where(x == m, cls_idx, C)                 # (TB,C,TT)
            pred = jnp.min(masked_idx, axis=1)                         # (TB,TT)
            viol = (((pred == 2) & bad2) | ((pred == 3) & bad3) |
                    ((pred == 4) & bad4) | ((pred == 5) & bad5))

            # max softmax prob == exp(m - lse) == 1 / sum(exp(x - m))
            pred_prob = pl.reciprocal(sumexp[:, 0, :], approx=False)   # (TB,TT)
            # NOTE: mirrors the PyTorch module exactly (no clamping): if
            # pred_prob rounds to 1.0 this is -log(0)=inf and 0*inf -> NaN.
            rbloss = -jnp.log(1.0 - pred_prob) * viol.astype(jnp.float32)
            loss = loss + rbloss

        # ---- exponential time weighting fused into the kernel ----
        if exponential:
            j = pl.program_id(1)
            t_local = lax.broadcasted_iota(jnp.int32, loss.shape, 1)   # (TB,TT)
            w = jnp.exp((t_local + j * TT - (T - 1)).astype(jnp.float32))
            loss = loss * w

        # ---- fold (TB, TT) per-element loss into a lane-dense (TB, 128) ----
        if TTb % 128 == 0:
            partial = loss[:, 0:128]
            for k in range(1, TTb // 128):
                partial = partial + loss[:, k * 128:(k + 1) * 128]
        else:
            rs = jnp.sum(loss, axis=1, keepdims=True)                  # (TB,1)
            lane_idx = lax.broadcasted_iota(jnp.int32, (TB, 128), 1)
            partial = jnp.where(lane_idx == 0, rs, 0.0)                # (TB,128)
        out_ref[...] = partial

    return kernel


def myloss(y_pre, y_true, lane_info, loss_type='celoss', exponential=False):
    if loss_type not in ('celoss', 'cerbloss'):
        raise ValueError(loss_type)
    B, C, T = y_pre.shape
    use_rb = (loss_type == 'cerbloss')

    TB, TT = _pick_tiles(B, T)
    gi, gj = B // TB, T // TT

    in_specs = [
        pl.BlockSpec((TB, C, TT), lambda i, j: (i, 0, j)),   # logits, native dtype
        pl.BlockSpec((TB, TT), lambda i, j: (i, j)),         # labels
    ]
    # TODO(synk): labels could be DMA'd as int16/int8 to cut HBM read traffic,
    # but sub-32-bit sublane tiling constraints make that fragile for small TB.
    args = [y_pre, y_true.astype(jnp.int32)]
    if use_rb:
        in_specs.append(pl.BlockSpec((TB, 3), lambda i, j: (i, 0)))
        args.append(lane_info.astype(jnp.int32))

    kernel = _make_kernel(use_rb, exponential, T, TT)

    # Per-(batch-tile, time-tile) lane-folded partial sums: tiny output, both
    # grid axes stay "parallel".
    partials = pl.pallas_call(
        kernel,
        out_shape=jax.ShapeDtypeStruct((B, gj * 128), jnp.float32),
        grid=(gi, gj),
        in_specs=in_specs,
        out_specs=pl.BlockSpec((TB, 128), lambda i, j: (i, j)),
        compiler_params=pltpu.CompilerParams(
            dimension_semantics=("parallel", "parallel")),
    )(*args)

    per_row = partials.sum(axis=1)           # (B,) per-batch (weighted) sums
    if exponential:
        return per_row.mean()                # weights already applied in-kernel
    return per_row.sum() / (B * T)           # plain mean over all (b, t)


def _reference(y_pre, y_true, lane_info, loss_type='celoss', exponential=False):
    """Pure-JAX reference mirroring the PyTorch module."""
    B, C, T = y_pre.shape
    y_pre = y_pre.astype(jnp.float32)
    logp = jax.nn.log_softmax(y_pre, axis=1)
    celoss = -jnp.take_along_axis(logp, y_true[:, None, :].astype(jnp.int32),
                                  axis=1)[:, 0, :]
    sm = jax.nn.softmax(y_pre, axis=1)
    pred_prob = jnp.max(sm, axis=1)
    pred = jnp.argmax(sm, axis=1)
    left = lane_info[:, 0:1]
    right = lane_info[:, 1:2]
    inter = lane_info[:, 2:3]
    viol = (((pred == 2) & (left == 0)) | ((pred == 4) & (right == 0)) |
            ((pred == 3) & (left == 1) & (right == 0)) |
            ((pred == 3) & (inter == 0)) |
            ((pred == 5) & (left == 0) & (right == 1)) |
            ((pred == 5) & (inter == 0)))
    rbloss = -jnp.log(1.0 - pred_prob) * viol.astype(jnp.float32)
    loss = celoss if loss_type == 'celoss' else celoss + rbloss
    if exponential:
        weights = jnp.exp(jnp.arange(-T + 1, 1, dtype=jnp.float32))[None, :]
        loss = (loss * weights).sum(axis=1).mean()
    else:
        loss = loss.mean()
    return loss


if __name__ == "__main__":
    key = jax.random.PRNGKey(0)
    k1, k2, k3, k4, k5, k6, k7, k8, k9 = jax.random.split(key, 9)

    # --- small case (full-extent blocks, grid (1,1)) ---
    B, C, T = 2, 6, 8
    y_pre = jax.random.normal(k1, (B, C, T), dtype=jnp.float32)
    y_true = jax.random.randint(k2, (B, T), 0, C).astype(jnp.int32)
    lane = jax.random.randint(k3, (B, 3), 0, 2).astype(jnp.int32)

    out = jax.block_until_ready(myloss(y_pre, y_true, lane, 'celoss', False))
    ref = _reference(y_pre, y_true, lane, 'celoss', False)
    assert jnp.allclose(out, ref, atol=1e-5, rtol=1e-4), (out, ref)

    out = jax.block_until_ready(myloss(y_pre, y_true, lane, 'cerbloss', True))
    ref = _reference(y_pre, y_true, lane, 'cerbloss', True)
    assert jnp.allclose(out, ref, atol=1e-5, rtol=1e-4), (out, ref)

    # --- larger case: T=384 -> TT=384, TB split to 8 for a (2,1) grid ---
    B2, C2, T2 = 16, 6, 384
    y_pre2 = jax.random.normal(k4, (B2, C2, T2), dtype=jnp.float32)
    y_true2 = jax.random.randint(k5, (B2, T2), 0, C2).astype(jnp.int32)
    lane2 = jax.random.randint(k6, (B2, 3), 0, 2).astype(jnp.int32)

    out = jax.block_until_ready(myloss(y_pre2, y_true2, lane2, 'cerbloss', False))
    ref = _reference(y_pre2, y_true2, lane2, 'cerbloss', False)
    assert jnp.allclose(out, ref, atol=1e-5, rtol=1e-4), (out, ref)

    out = jax.block_until_ready(myloss(y_pre2, y_true2, lane2, 'celoss', True))
    ref = _reference(y_pre2, y_true2, lane2, 'celoss', True)
    assert jnp.allclose(out, ref, atol=1e-5, rtol=1e-4), (out, ref)

    # --- case exercising multiple time tiles (grid (1,2)) + chunked lane fold ---
    B3, C3, T3 = 8, 6, 512
    y_pre3 = jax.random.normal(k7, (B3, C3, T3), dtype=jnp.float32)
    y_true3 = jax.random.randint(k8, (B3, T3), 0, C3).astype(jnp.int32)
    lane3 = jax.random.randint(k9, (B3, 3), 0, 2).astype(jnp.int32)

    out = jax.block_until_ready(myloss(y_pre3, y_true3, lane3, 'cerbloss', True))
    ref = _reference(y_pre3, y_true3, lane3, 'cerbloss', True)
    assert jnp.allclose(out, ref, atol=1e-5, rtol=1e-4), (out, ref)

    out = jax.block_until_ready(myloss(y_pre3, y_true3, lane3, 'celoss', False))
    ref = _reference(y_pre3, y_true3, lane3, 'celoss', False)
    assert jnp.allclose(out, ref, atol=1e-5, rtol=1e-4), (out, ref)

    # --- bf16 logits: DMA'd in native dtype, f32 cast fused at point of use ---
    y_pre_bf16 = y_pre2.astype(jnp.bfloat16)
    out = jax.block_until_ready(myloss(y_pre_bf16, y_true2, lane2, 'cerbloss', True))
    ref = _reference(y_pre_bf16.astype(jnp.float32), y_true2, lane2, 'cerbloss', True)
    assert jnp.allclose(out, ref, atol=1e-5, rtol=1e-4), (out, ref)

    print("KERNEL_OK")
</pallas_src>

<mosaic_0001>
module attributes {stable_mosaic.version = 11 : i64} {
  func.func @kernel(%arg0: i32, %arg1: i32, %arg2: memref<2x6x8xf32, #tpu.memory_space<vmem>>, %arg3: memref<2x8xi32, #tpu.memory_space<vmem>>, %arg4: memref<2x128xf32, #tpu.memory_space<vmem>>) attributes {dimension_semantics = [#tpu.dimension_semantics<parallel>, #tpu.dimension_semantics<parallel>], iteration_bounds = array<i64: 1, 1>, scalar_prefetch = 0 : i64, scratch_operands = 0 : i64, tpu.core_type = #tpu.core_type<tc>, window_params = [{transform_indices = @transform_0, window_bounds = array<i64: 2, 6, 8>}, {transform_indices = @transform_1, window_bounds = array<i64: 2, 8>}, {transform_indices = @transform_2, window_bounds = array<i64: 2, 128>}]} {
    %c0 = arith.constant 0 : index
    %c0_0 = arith.constant 0 : index
    %c0_1 = arith.constant 0 : index
    %0 = vector.load %arg2[%c0, %c0_0, %c0_1] : memref<2x6x8xf32, #tpu.memory_space<vmem>>, vector<2x6x8xf32>
    %c0_2 = arith.constant 0 : index
    %c0_3 = arith.constant 0 : index
    %1 = vector.load %arg3[%c0_2, %c0_3] : memref<2x8xi32, #tpu.memory_space<vmem>>, vector<2x8xi32>
    %2 = tpu.iota {dimensions = array<i32: 1>} : vector<1x6x8xi32>
    %cst = arith.constant dense<0xFF800000> : vector<2x8xf32>
    %3 = vector.multi_reduction <maximumf>, %0, %cst [1] : vector<2x6x8xf32> to vector<2x8xf32>
    %4 = vector.shape_cast %3 : vector<2x8xf32> to vector<2x1x8xf32>
    %5 = vector.broadcast %4 : vector<2x1x8xf32> to vector<2x6x8xf32>
    %6 = arith.subf %0, %5 : vector<2x6x8xf32>
    %7 = math.exp %6 : vector<2x6x8xf32>
    %cst_4 = arith.constant dense<0.000000e+00> : vector<2x8xf32>
    %8 = vector.multi_reduction <add>, %7, %cst_4 [1] : vector<2x6x8xf32> to vector<2x8xf32>
    %9 = vector.shape_cast %8 : vector<2x8xf32> to vector<2x1x8xf32>
    %10 = vector.shape_cast %1 : vector<2x8xi32> to vector<2x1x8xi32>
    %11 = vector.broadcast %2 : vector<1x6x8xi32> to vector<2x6x8xi32>
    %12 = vector.broadcast %10 : vector<2x1x8xi32> to vector<2x6x8xi32>
    %13 = arith.cmpi eq, %11, %12 : vector<2x6x8xi32>
    %cst_5 = arith.constant 0.000000e+00 : f32
    %14 = vector.broadcast %cst_5 : f32 to vector<2x6x8xf32>
    %15 = arith.select %13, %0, %14 : vector<2x6x8xi1>, vector<2x6x8xf32>
    %cst_6 = arith.constant dense<0.000000e+00> : vector<2x8xf32>
    %16 = vector.multi_reduction <add>, %15, %cst_6 [1] : vector<2x6x8xf32> to vector<2x8xf32>
    %17 = vector.shape_cast %4 : vector<2x1x8xf32> to vector<2x8xf32>
    %18 = vector.shape_cast %9 : vector<2x1x8xf32> to vector<2x8xf32>
    %19 = math.log %18 : vector<2x8xf32>
    %20 = arith.addf %17, %19 : vector<2x8xf32>
    %21 = arith.subf %20, %16 : vector<2x8xf32>
    %cst_7 = arith.constant dense<0.000000e+00> : vector<2xf32>
    %22 = vector.multi_reduction <add>, %21, %cst_7 [1] : vector<2x8xf32> to vector<2xf32>
    %23 = vector.shape_cast %22 : vector<2xf32> to vector<2x1xf32>
    %24 = tpu.iota {dimensions = array<i32: 1>} : vector<2x128xi32>
    %c0_i32 = arith.constant 0 : i32
    %25 = vector.broadcast %c0_i32 : i32 to vector<2x128xi32>
    %26 = arith.cmpi eq, %24, %25 : vector<2x128xi32>
    %cst_8 = arith.constant 0.000000e+00 : f32
    %27 = vector.shape_cast %23 : vector<2x1xf32> to vector<2x1xf32>
    %28 = vector.broadcast %27 : vector<2x1xf32> to vector<2x128xf32>
    %29 = vector.broadcast %cst_8 : f32 to vector<2x128xf32>
    %30 = arith.select %26, %28, %29 : vector<2x128xi1>, vector<2x128xf32>
    %c0_9 = arith.constant 0 : index
    %c0_10 = arith.constant 0 : index
    %31 = vector.load %arg4[%c0_9, %c0_10] : memref<2x128xf32, #tpu.memory_space<vmem>>, vector<2x128xf32>
    tpu.vector_store %arg4[%c0_9, %c0_10], %30 {strides = array<i32>} : memref<2x128xf32, #tpu.memory_space<vmem>>, vector<2x128xf32>,
    return
  }
  func.func @transform_0(%arg0: i32, %arg1: i32) -> (i32, i32, i32) {
    %c0_i32 = arith.constant 0 : i32
    %c0_i32_0 = arith.constant 0 : i32
    return %arg0, %c0_i32, %arg1 : i32, i32, i32
  }
  func.func @transform_1(%arg0: i32, %arg1: i32) -> (i32, i32) {
    %c0_i32 = arith.constant 0 : i32
    return %arg0, %arg1 : i32, i32
  }
  func.func @transform_2(%arg0: i32, %arg1: i32) -> (i32, i32) {
    %c0_i32 = arith.constant 0 : i32
    return %arg0, %arg1 : i32, i32
  }
}

</mosaic_0001>

<llo_original>
// kernel: tpu_custom_call.1
$region0: #{tpu_custom_call.1}
  #allocation0 [shape = 'u32[]', space=smem, size = 0x4, offset = 0x4, fixed_abs, tag = 'smem constant byte address 0x4 - core index']
  #allocation1 [shape = 'u32[72,128]{1,0:T(1,128)}', space=vmem, size = 0x9000, scoped, tag = 'internal scratch']
  %s0 = inlined_call_operand.vmem [shape: f32[2,6,8], index: 0, kind: input, shape index: {}]
  %s1 = inlined_call_operand.vmem [shape: s32[2,8], index: 1, kind: input, shape index: {}]
  %s2 = inlined_call_operand.hbm [shape: f32[2,128], index: 2, kind: output, shape index: {}]
  %s3 = sld [smem:[#allocation0]]
  $region18: #{tpu_custom_call.1} parent=0
    _
  %s5 = ssub.s32 1, %s3
  %s6 = scalar_select 0, %s5, %s3
  $region1: #{tpu_custom_call.1} parent=0
    #allocation2 [shape = 'u8[1024]{0}', space=vmem, size = 0x400, scoped, tag = 'output window, operand 0, single buffered']
    #allocation3 [shape = 's32[1]{0}', space=sflag, size = 0x4, scoped, tag = 'scoped memory for tpu_custom_call.1']
    %7 = vsyncpa [#allocation3], 0
    // Predicated region
    $region2: #{tpu_custom_call.1} parent=1 // pred_check
      _
    $region3: #{tpu_custom_call.1} parent=1 // pred_check_branch
      %9 = sbr.rel (0) target = $region5
    $region4: #{tpu_custom_call.1} parent=1 // pred_region
      _
    $region5: #{tpu_custom_call.1} parent=1 // pred_fallthru
      _
    // Predicated region
    $region6: #{tpu_custom_call.1} parent=1 // pred_check
      _
    $region7: #{tpu_custom_call.1} parent=1 // pred_check_branch
      %11 = sbr.rel (0) target = $region9
    $region8: #{tpu_custom_call.1} parent=1 // pred_region
      _
    $region9: #{tpu_custom_call.1} parent=1 // pred_fallthru
      _
    %v12 = vld [vmem:[%s0] sm:$0x3f]
    %v13 = vld [vmem:[%s0 + $0x8] sm:$0x3f]
    %v14 = vld [vmem:[%s1] sm:$0x3]
    %v15 = vlaneseq
    %v16 = vshrl.u32 %v15, 7
    %vm17 = vcmask 62464
    %v18 = vsel %vm17, %v12, -inf
    %v19 = vrot.slane %v18, 4
    %v20 = vmax.f32 %v18, %v19
    %v21 = vrot.slane %v20, 2
    %v22 = vmax.f32 %v20, %v21
    %v23 = vrot.slane %v22, 1
    %v24 = vmax.f32 %v22, %v23
    %v25 = vsel %vm17, %v13, -inf
    %v26 = vrot.slane %v25, 4
    %v27 = vmax.f32 %v25, %v26
    %v28 = vrot.slane %v27, 2
    %v29 = vmax.f32 %v27, %v28
    %v30 = vrot.slane %v29, 1
    %v31 = vmax.f32 %v29, %v30
    %v32 = vsub.f32 %v12, %v24
    %v33 = vsub.f32 %v13, %v31
    %v34 = vmul.f32 %v32, 1.442695
    %v35 = vpow.pop %v34
    %v36 = vmul.f32 %v33, 1.442695
    %v37 = vpow.pop %v36
    %v38 = vsel %vm17, %v35, 0.0
    %v39 = vrot.slane %v38, 4
    %v40 = vadd.f32 %v38, %v39
    %v41 = vrot.slane %v40, 2
    %v42 = vadd.f32 %v40, %v41
    %v43 = vrot.slane %v42, 1
    %v44 = vadd.f32 %v42, %v43
    %v45 = vsel %vm17, %v37, 0.0
    %v46 = vrot.slane %v45, 4
    %v47 = vadd.f32 %v45, %v46
    %v48 = vrot.slane %v47, 2
    %v49 = vadd.f32 %v47, %v48
    %v50 = vrot.slane %v49, 1
    %v51 = vadd.f32 %v49, %v50
    %v52 = vrot.slane %v14, 1
    %v53 = vperm.slane %v14, 0
    %v54 = vperm.slane %v52, 0
    %vm55 = vcmp.eq.s32.totalorder %v16, %v53
    %vm56 = vcmp.eq.s32.totalorder %v16, %v54
    %v57 = vsel %vm55, %v12, 0.0
    %v58 = vsel %vm56, %v13, 0.0
    %v59 = vsel %vm17, %v57, 0.0
    %v60 = vrot.slane %v59, 4
    %v61 = vadd.f32 %v59, %v60
    %v62 = vrot.slane %v61, 2
    %v63 = vadd.f32 %v61, %v62
    %v64 = vrot.slane %v63, 1
    %v65 = vadd.f32 %v63, %v64
    %v66 = vsel %vm17, %v58, 0.0
    %v67 = vrot.slane %v66, 4
    %v68 = vadd.f32 %v66, %v67
    %v69 = vrot.slane %v68, 2
    %v70 = vadd.f32 %v68, %v69
    %v71 = vrot.slane %v70, 1
    %v72 = vadd.f32 %v70, %v71
    %v73 = vlog2.pop %v44
    %v74 = vmul.f32 %v73, 0.6931472
    %v75 = vlog2.pop %v51
    %v76 = vmul.f32 %v75, 0.6931472
    %v77 = vadd.f32 %v24, %v74
    %v78 = vadd.f32 %v31, %v76
    %v79 = vsub.f32 %v77, %v65
    %v80 = vsub.f32 %v78, %v72
    %vm83 = vcmask 1041409
    %v84 = vsel %vm83, %v80, %v79
    %vm86 = vcmask 58368
    %v87 = vsel %vm86, %v84, 0.0
    %88 = vadd.xlane.f32.xlu0 %v87
    %v89 = vpop.xlane.xlu0 %88
    %v90 = vlaneseq
    %v91 = vand.u32 %v90, 127
    %vm92 = vcmp.eq.s32.totalorder %v91, 0
    %v93 = vsel %vm92, %v89, 0.0
    %94 = vst [vmem:[#allocation2] sm:$0x3] %v93
    // Predicated region
    $region10: #{tpu_custom_call.1} parent=1 // pred_check
      _
    $region11: #{tpu_custom_call.1} parent=1 // pred_check_branch
      %96 = sbr.rel (0) target = $region13
    $region12: #{tpu_custom_call.1} parent=1 // pred_region
      %98 = vsyncadd [#allocation3], 0
      %s100 = sshll.u32 [#allocation2], 4
      %s101 = int_to_ptr.vmem [resolvable:$true] %s100
      %s102 = sshll.u32 %s2, 4
      %s103 = int_to_ptr.hbm [resolvable:$true] %s102
      %105 = dma.vmem_to_hbm [thread:$0]  %s101, 32, %s103, [#allocation3]
    $region13: #{tpu_custom_call.1} parent=1 // pred_fallthru
      _
    // Predicated region
    $region14: #{tpu_custom_call.1} parent=1 // pred_check
      _
    $region15: #{tpu_custom_call.1} parent=1 // pred_check_branch
      %107 = sbr.rel (0) target = $region17
    $region16: #{tpu_custom_call.1} parent=1 // pred_region
      %109 = dma.done [#allocation3], 32
    $region17: #{tpu_custom_call.1} parent=1 // pred_fallthru
      _
    %110 = vsyncpa [#allocation3], 1

</llo_original>
